<compile_context>
chip_gen: v5e
topology: v5e:2x2
jax: 0.10.0
libtpu: 0.0.40
codegen_flags: <defaults>
</compile_context>

<pallas_src>
import functools
import math

import jax
import jax.numpy as jnp
import numpy as np
from jax.experimental import pallas as pl
from jax.experimental.pallas import tpu as pltpu


def _style2layer_kernel(mw_ref, x_ref, bias_ref, o_ref, *, lrelu_slope, precision):
    # mw_ref:   (1, Cout, Cin) io   per-batch demodulated weight, act_gain already folded
    # x_ref:    (1, Cin, TP)   io   current spatial tile, channels on the sublane axis
    # bias_ref: (Cout, 1)      f32  bias pre-scaled by act_gain
    # o_ref:    (1, Cout, TP)  io
    mw = mw_ref[0]                                                     # (Cout, Cin)
    x = x_ref[0]                                                       # (Cin, TP)
    # MXU-natural form: (Cout, Cin) @ (Cin, TP) -> (Cout, TP), f32 accumulation.
    y = jax.lax.dot_general(mw, x, (((1,), (0,)), ((), ())),
                            preferred_element_type=jnp.float32,
                            precision=precision)
    y = y + bias_ref[...]                                              # bias already * gain
    y = jnp.maximum(y, lrelu_slope * y)                                # lrelu (gain folded)
    o_ref[0] = y.astype(o_ref.dtype)


def _round_up(n, m):
    return ((n + m - 1) // m) * m


def _vmem_capacity_bytes(default=64 * 2**20):
    """Physical per-core VMEM (conservative 64 MiB fallback)."""
    try:
        info = pltpu.get_tpu_info()
        cap = int(getattr(info, "vmem_capacity_bytes", 0))
        return cap if cap > 0 else default
    except Exception:
        return default


def _choose_tile_p(P, Cin, Cout, io_bytes, max_tp, vmem_budget_bytes):
    """Largest spatial tile TP (multiple of 128 dividing P) within the VMEM budget."""
    assert P % 128 == 0
    denom = max(2 * (Cin + Cout) * io_bytes, 1)   # double-buffered x + out streams
    cap = max(128, vmem_budget_bytes // denom)
    cap = min(cap, max(max_tp, 128), P)
    tp = 128
    t = 256
    while t <= cap:
        if P % t == 0:
            tp = t
        t += 128
    return tp


def style2layer_forward(x_nchw, w, params, gain=1.0, io_dtype=jnp.bfloat16,
                        max_tp=4096, vmem_budget_bytes=None):
    """Modulated 1x1 conv + demod + lrelu (the Style2Layer inside PostNeuralRendererNetwork).

    x_nchw: (B, Cin, H, W), w: (B, Wdim) latent styles. Returns (B, Cout, H, W) in io_dtype.
    """
    B, Cin, H, W = x_nchw.shape
    P = H * W
    Cout, Cin_w = params["weight"].shape
    assert Cin_w == Cin
    Wdim = params["affine_weight"].shape[1]

    io_dtype = jnp.dtype(io_dtype)
    io_bytes = io_dtype.itemsize

    act_gain = math.sqrt(2.0) * gain  # lrelu def_gain * gain
    # Folding act_gain into the weight/bias BEFORE the leaky-ReLU relies on positive
    # homogeneity of lrelu -> only valid for a positive gain.
    assert act_gain > 0.0, "act_gain must be positive to fold it before leaky-ReLU"

    # --- Hoisted per-batch math (one XLA pass over (B, Cout, Cin)) -----------------
    w_gain = 1.0 / math.sqrt(Wdim)
    styles = (w.astype(jnp.float32) @ params["affine_weight"].astype(jnp.float32).T) * w_gain
    styles = styles + params["affine_bias"].astype(jnp.float32)          # (B, Cin), bias_init=1
    mw = params["weight"].astype(jnp.float32)[None] * styles[:, None, :]  # (B, Cout, Cin)
    d = jax.lax.rsqrt(jnp.sum(mw * mw, axis=2, keepdims=True) + 1e-8)
    # Fold lrelu gain and cast ONCE (intended mixed precision when io_dtype=bf16).
    mw = (mw * (d * act_gain)).astype(io_dtype)
    bias = (params["bias"].astype(jnp.float32) * act_gain).reshape(Cout, 1)

    # --- Layout: NCHW -> (B, Cin, P) is a free reshape; pad P to a 128 multiple. ----
    x = x_nchw.reshape(B, Cin, P).astype(io_dtype)
    P_pad = _round_up(P, 128)
    if P_pad != P:
        x = jnp.pad(x, ((0, 0), (0, 0), (0, P_pad - P)))

    # --- Generation-aware VMEM sizing ------------------------------------------------
    vmem_cap = _vmem_capacity_bytes()
    if vmem_budget_bytes is None:
        vmem_budget_bytes = min(vmem_cap // 4, 32 * 2**20)   # ~16 MiB v7x, 32 MiB v5e/v6e

    tp = _choose_tile_p(P_pad, Cin, Cout, io_bytes, max_tp, vmem_budget_bytes)
    n_tp = P_pad // tp

    per_step_bytes = (2 * tp * (Cin + Cout) * io_bytes      # double-buffered x / out tiles
                      + 2 * Cout * Cin * io_bytes           # double-buffered per-batch weight
                      + 2 * Cout * 4)                       # bias
    vmem_limit = int(min(0.75 * vmem_cap,
                         max(min(32 * 2**20, 0.75 * vmem_cap), 1.5 * per_step_bytes)))

    precision = jax.lax.Precision.HIGHEST if io_dtype == jnp.dtype(jnp.float32) else None
    kernel = functools.partial(_style2layer_kernel, lrelu_slope=0.2, precision=precision)

    flops = 2 * B * P_pad * Cin * Cout
    bytes_accessed = (B * Cin * P_pad * io_bytes + B * Cout * P_pad * io_bytes
                      + mw.size * io_bytes + bias.size * 4)

    out = pl.pallas_call(
        kernel,
        out_shape=jax.ShapeDtypeStruct((B, Cout, P_pad), io_dtype),
        grid_spec=pltpu.PrefetchScalarGridSpec(
            num_scalar_prefetch=0,
            grid=(B, n_tp),
            in_specs=[
                pl.BlockSpec((1, Cout, Cin), lambda b, t: (b, 0, 0)),  # demod weight (per batch)
                pl.BlockSpec((1, Cin, tp), lambda b, t: (b, 0, t)),    # x spatial tile
                pl.BlockSpec((Cout, 1), lambda b, t: (0, 0)),          # bias * gain (resident)
            ],
            out_specs=pl.BlockSpec((1, Cout, tp), lambda b, t: (b, 0, t)),
        ),
        compiler_params=pltpu.CompilerParams(
            dimension_semantics=("parallel", "parallel"),
            vmem_limit_bytes=vmem_limit,
        ),
        cost_estimate=pl.CostEstimate(
            flops=int(flops), transcendentals=0, bytes_accessed=int(bytes_accessed)),
    )(mw, x, bias)

    if P_pad != P:
        out = out[:, :, :P]
    # Free reshape back to NCHW.
    return out.reshape(B, Cout, H, W)


def style2layer_reference(x_nchw, w, params, gain=1.0):
    """Pure-JAX reference matching the PyTorch module's math (f32)."""
    Wdim = params["affine_weight"].shape[1]
    styles = w @ (params["affine_weight"] / math.sqrt(Wdim)).T + params["affine_bias"]
    mw = params["weight"][None] * styles[:, None, :]                   # (B, Cout, Cin)
    d = 1.0 / jnp.sqrt(jnp.sum(mw * mw, axis=2) + 1e-8)                # (B, Cout)
    mw = mw * d[:, :, None]
    y = jnp.einsum("bihw,boi->bohw", x_nchw, mw)
    y = y + params["bias"][None, :, None, None]
    return jnp.where(y >= 0, y, 0.2 * y) * (math.sqrt(2.0) * gain)


if __name__ == "__main__":
    B, Cin, Cout, H, W, Wdim = 2, 4, 8, 16, 16, 8

    key = jax.random.PRNGKey(0)
    k_x, k_w, k_weight, k_aff, k_x2 = jax.random.split(key, 5)

    x = jax.random.normal(k_x, (B, Cin, H, W), dtype=jnp.float32)   # NCHW, as in PyTorch
    w = jax.random.normal(k_w, (B, Wdim), dtype=jnp.float32)        # latent styles

    # Deterministic parameter init mirroring the module's __init__ (w_dim > 0 branch):
    #   conv weight ~ randn([Cout, Cin, 1, 1]) (squeezed here), bias = 0,
    #   affine: weight ~ randn([Cin, Wdim]), bias init = 1.
    params = {
        "weight": jax.random.normal(k_weight, (Cout, Cin), dtype=jnp.float32),
        "bias": jnp.zeros((Cout,), dtype=jnp.float32),
        "affine_weight": jax.random.normal(k_aff, (Cin, Wdim), dtype=jnp.float32),
        "affine_bias": jnp.ones((Cin,), dtype=jnp.float32),
    }

    ref = style2layer_reference(x, w, params)

    # 1) f32 I/O, small max_tp to force the spatially tiled grid path (grid = (B, 2)).
    out_f32 = style2layer_forward(x, w, params, io_dtype=jnp.float32, max_tp=128)
    out_f32 = jax.block_until_ready(out_f32)
    np.testing.assert_allclose(np.asarray(out_f32), np.asarray(ref), rtol=1e-4, atol=1e-4)

    # 2) bf16 I/O (the bandwidth-optimal production default), single spatial tile.
    out_bf16 = style2layer_forward(x, w, params)
    out_bf16 = jax.block_until_ready(out_bf16)
    ref_bf16 = style2layer_reference(x.astype(jnp.bfloat16).astype(jnp.float32), w, params)
    np.testing.assert_allclose(np.asarray(out_bf16.astype(jnp.float32)),
                               np.asarray(ref_bf16), rtol=3e-2, atol=3e-2)

    # 3) Non-128-divisible spatial extent (P = 144) exercises the wrapper padding path.
    x2 = jax.random.normal(k_x2, (B, Cin, 12, 12), dtype=jnp.float32)
    out_pad = style2layer_forward(x2, w, params, io_dtype=jnp.float32)
    out_pad = jax.block_until_ready(out_pad)
    ref_pad = style2layer_reference(x2, w, params)
    np.testing.assert_allclose(np.asarray(out_pad), np.asarray(ref_pad), rtol=1e-4, atol=1e-4)

    # TODO(synk): magnitude_ema_beta > 0 branch (training-time EMA state update), the
    # w_dim == 0 plain linear/ReLU branch, noise injection, and the container-level
    # progressive upsample / ToRGB-skip orchestration of PostNeuralRendererNetwork are
    # not covered by this kernel (they are control flow / training state, not TPU compute).
    print("KERNEL_OK")
</pallas_src>

<mosaic_0001>
module attributes {stable_mosaic.version = 11 : i64} {
  func.func @_style2layer_kernel(%arg0: i32, %arg1: i32, %arg2: memref<1x8x4xf32, #tpu.memory_space<vmem>>, %arg3: memref<1x4x128xf32, #tpu.memory_space<vmem>>, %arg4: memref<8x1xf32, #tpu.memory_space<vmem>>, %arg5: memref<1x8x128xf32, #tpu.memory_space<vmem>>) attributes {dimension_semantics = [#tpu.dimension_semantics<parallel>, #tpu.dimension_semantics<parallel>], iteration_bounds = array<i64: 2, 2>, scalar_prefetch = 0 : i64, scratch_operands = 0 : i64, tpu.core_type = #tpu.core_type<tc>, window_params = [{transform_indices = @transform_0, window_bounds = array<i64: 1, 8, 4>}, {transform_indices = @transform_1, window_bounds = array<i64: 1, 4, 128>}, {pipeline_mode = #tpu.pipeline_mode<synchronous>, transform_indices = @transform_2, window_bounds = array<i64: 8, 1>}, {transform_indices = @transform_3, window_bounds = array<i64: 1, 8, 128>}]} {
    %c0 = arith.constant 0 : index
    %c0_0 = arith.constant 0 : index
    %c0_1 = arith.constant 0 : index
    %0 = vector.load %arg2[%c0, %c0_0, %c0_1] : memref<1x8x4xf32, #tpu.memory_space<vmem>>, vector<1x8x4xf32>
    %1 = vector.shape_cast %0 : vector<1x8x4xf32> to vector<8x4xf32>
    %c0_2 = arith.constant 0 : index
    %c0_3 = arith.constant 0 : index
    %c0_4 = arith.constant 0 : index
    %2 = vector.load %arg3[%c0_2, %c0_3, %c0_4] : memref<1x4x128xf32, #tpu.memory_space<vmem>>, vector<1x4x128xf32>
    %3 = vector.shape_cast %2 : vector<1x4x128xf32> to vector<4x128xf32>
    %cst = arith.constant dense<0.000000e+00> : vector<8x128xf32>
    %4 = tpu.matmul %1, %3, %cst {dimension_numbers = #tpu.dot_dimension_numbers<[1], [0], [0], [1], [0, 0, 1, 1], [], []>, precision = #tpu.contract_precision<fp32>} : vector<8x4xf32>, vector<4x128xf32>, vector<8x128xf32> -> vector<8x128xf32>
    %c0_5 = arith.constant 0 : index
    %c0_6 = arith.constant 0 : index
    %5 = vector.load %arg4[%c0_5, %c0_6] : memref<8x1xf32, #tpu.memory_space<vmem>>, vector<8x1xf32>
    %6 = vector.broadcast %5 : vector<8x1xf32> to vector<8x128xf32>
    %7 = arith.addf %4, %6 : vector<8x128xf32>
    %cst_7 = arith.constant 2.000000e-01 : f32
    %8 = vector.broadcast %cst_7 : f32 to vector<8x128xf32>
    %9 = arith.mulf %8, %7 : vector<8x128xf32>
    %10 = arith.maximumf %7, %9 : vector<8x128xf32>
    %c0_8 = arith.constant 0 : index
    %c0_9 = arith.constant 0 : index
    %c0_10 = arith.constant 0 : index
    %11 = vector.load %arg5[%c0_8, %c0_9, %c0_10] : memref<1x8x128xf32, #tpu.memory_space<vmem>>, vector<1x8x128xf32>
    %12 = vector.shape_cast %11 : vector<1x8x128xf32> to vector<8x128xf32>
    %13 = vector.shape_cast %10 : vector<8x128xf32> to vector<1x8x128xf32>
    tpu.vector_store %arg5[%c0_8, %c0_9, %c0_10], %13 {strides = array<i32>} : memref<1x8x128xf32, #tpu.memory_space<vmem>>, vector<1x8x128xf32>,
    return
  }
  func.func @transform_0(%arg0: i32, %arg1: i32) -> (i32, i32, i32) {
    %c0_i32 = arith.constant 0 : i32
    %c0_i32_0 = arith.constant 0 : i32
    %c0_i32_1 = arith.constant 0 : i32
    return %arg0, %c0_i32, %c0_i32_0 : i32, i32, i32
  }
  func.func @transform_1(%arg0: i32, %arg1: i32) -> (i32, i32, i32) {
    %c0_i32 = arith.constant 0 : i32
    %c0_i32_0 = arith.constant 0 : i32
    return %arg0, %c0_i32, %arg1 : i32, i32, i32
  }
  func.func @transform_2(%arg0: i32, %arg1: i32) -> (i32, i32) {
    %c0_i32 = arith.constant 0 : i32
    %c0_i32_0 = arith.constant 0 : i32
    %c0_i32_1 = arith.constant 0 : i32
    return %c0_i32, %c0_i32_0 : i32, i32
  }
  func.func @transform_3(%arg0: i32, %arg1: i32) -> (i32, i32, i32) {
    %c0_i32 = arith.constant 0 : i32
    %c0_i32_0 = arith.constant 0 : i32
    return %arg0, %c0_i32, %arg1 : i32, i32, i32
  }
}

</mosaic_0001>

<llo_original>
// kernel: tpu_custom_call.1
$region0: #{tpu_custom_call.1}
  #allocation0 [shape = 'u32[]', space=smem, size = 0x4, offset = 0x4, fixed_abs, tag = 'smem constant byte address 0x4 - core index']
  #allocation1 [shape = 'u32[72,128]{1,0:T(1,128)}', space=vmem, size = 0x9000, scoped, tag = 'internal scratch']
  %s0 = inlined_call_operand.vmem [shape: f32[2,8,4], index: 0, kind: input, shape index: {}]
  %s1 = inlined_call_operand.vmem [shape: f32[2,4,256], index: 1, kind: input, shape index: {}]
  %s2 = inlined_call_operand.vmem [shape: f32[8,1], index: 2, kind: input, shape index: {}]
  %s3 = inlined_call_operand.hbm [shape: f32[2,8,256], index: 3, kind: output, shape index: {}]
  %s4 = sld [smem:[#allocation0]]
  $region45: #{tpu_custom_call.1} parent=0
    _
  %s6 = ssub.s32 1, %s4
  %s7 = scalar_select 0, %s6, %s4
  $region1: #{tpu_custom_call.1} parent=0
    #allocation2 [shape = 'u8[8192]{0}', space=vmem, size = 0x2000, scoped, tag = 'output window, operand 0']
    #allocation3 [shape = 's32[2]{0}', space=sflag, size = 0x8, scoped, tag = 'scoped memory for tpu_custom_call.1']
    %8 = vsyncpa [#allocation3], 0
    %s9 = scalar_lea.sflag [#allocation3], 1
    %10 = vsyncpa %s9, 0
    loop: start=0, step=1, limit=6
    $region2: #{tpu_custom_call.1} parent=1 // loop_pre_header
      _
    $region3: #{tpu_custom_call.1} parent=1 // loop_header
      %s12 = sphi 0, %s16
      %p13 = scmp.ge.s32.totalorder %s12, 6
      %s19 = sphi 0, %s31
      %s20 = sphi 0, %s27
      %s21 = sphi 0, %s19
      %s22 = sphi 0, %s20
      %s23 = sphi 0, %s21
      %s24 = sphi 0, %s22
      %s34 = sphi 0, %s36
      %s37 = sphi 0, %s34
      %s38 = sphi 0, %s37
      %s54 = sphi 0, %s38
      %s62 = sphi 0, %s64
      %s65 = sphi 0, %s62
      %s66 = sphi 0, %s65
      %s82 = sphi 0, %s66
      %s86 = sphi 0, %s86
      %s88 = sphi 0, %s86
      %s89 = sphi 0, %s88
      %s103 = sphi 0, %s89
      %s111 = sphi 0, %s113
      %s114 = sphi 0, %s111
      %s115 = sphi 0, %s114
      %s131 = sphi 0, %s115
    $region4: #{tpu_custom_call.1} parent=1 // loop_header_branch
      %15 = sbr.rel (%p13) target = $region8
    $region5: #{tpu_custom_call.1} parent=1 // loop_body
      %s17 = ssub.s32 %s12, 1
      %s18 = ssub.s32 %s12, 2
      %s25 = sadd.s32 1, %s20
      %p26 = scmp.ge.s32.totalorder %s25, 2
      %s27 = scalar_select %p26, 0, %s25
      %s28 = sadd.s32 1, %s19
      %s29 = scalar_select %p26, %s28, %s19
      %p30 = scmp.ge.s32.totalorder %s29, 2
      %s31 = scalar_select %p30, 0, %s29
      %s32 = ssub.s32 %s19, %s31
      %p33 = scmp.eq.s32.totalorder %s32, 0
      %s35 = sadd.s32 %s34, 1
      %s36 = scalar_select %p33, %s34, %s35
      %p39 = pneg %p33
      %p40 = scmp.eq.s32.totalorder %s12, 3
      %p41 = por %p39, %p40
      %p42 = scmp.ne.s32.totalorder %s34, %s37
      %p43 = scmp.eq.s32.totalorder %s12, 0
      %p44 = por %p42, %p43
      %p45 = scmp.ne.s32.totalorder %s34, %s37
      %p46 = scmp.eq.s32.totalorder %s17, 3
      %p47 = por %p45, %p46
      %p48 = scmp.ne.s32.totalorder %s37, %s38
      %p49 = scmp.eq.s32.totalorder %s17, 0
      %p50 = por %p48, %p49
      %p51 = scmp.ne.s32.totalorder %s37, %s38
      %p52 = scmp.eq.s32.totalorder %s18, 3
      %p53 = por %p51, %p52
      %p55 = scmp.ne.s32.totalorder %s38, %s54
      %p56 = scmp.eq.s32.totalorder %s18, 0
      %p57 = por %p55, %p56
      %s58 = ssub.s32 %s19, %s31
      %s59 = ssub.s32 %s20, %s27
      %s60 = sor.u32 %s58, %s59
      %p61 = scmp.eq.s32.totalorder %s60, 0
      %s63 = sadd.s32 %s62, 1
      %s64 = scalar_select %p61, %s62, %s63
      %p67 = pneg %p61
      %p68 = scmp.eq.s32.totalorder %s12, 3
      %p69 = por %p67, %p68
      %p70 = scmp.ne.s32.totalorder %s62, %s65
      %p71 = scmp.eq.s32.totalorder %s12, 0
      %p72 = por %p70, %p71
      %p73 = scmp.ne.s32.totalorder %s62, %s65
      %p74 = scmp.eq.s32.totalorder %s17, 3
      %p75 = por %p73, %p74
      %p76 = scmp.ne.s32.totalorder %s65, %s66
      %p77 = scmp.eq.s32.totalorder %s17, 0
      %p78 = por %p76, %p77
      %p79 = scmp.ne.s32.totalorder %s65, %s66
      %p80 = scmp.eq.s32.totalorder %s18, 3
      %p81 = por %p79, %p80
      %p83 = scmp.ne.s32.totalorder %s66, %s82
      %p84 = scmp.eq.s32.totalorder %s18, 0
      %p85 = por %p83, %p84
      %s87 = sadd.s32 %s86, 1
      %p90 = scmp.eq.s32.totalorder %s12, 3
      %p91 = scmp.ne.s32.totalorder %s86, %s88
      %p92 = scmp.eq.s32.totalorder %s12, 0
      %p93 = por %p91, %p92
      %p94 = scmp.ne.s32.totalorder %s86, %s88
      %p95 = scmp.eq.s32.totalorder %s17, 3
      %p96 = por %p94, %p95
      %p97 = scmp.ne.s32.totalorder %s88, %s89
      %p98 = scmp.eq.s32.totalorder %s17, 0
      %p99 = por %p97, %p98
      %p100 = scmp.ne.s32.totalorder %s88, %s89
      %p101 = scmp.eq.s32.totalorder %s18, 3
      %p102 = por %p100, %p101
      %p104 = scmp.ne.s32.totalorder %s89, %s103
      %p105 = scmp.eq.s32.totalorder %s18, 0
      %p106 = por %p104, %p105
      %s107 = ssub.s32 %s19, %s31
      %s108 = ssub.s32 %s20, %s27
      %s109 = sor.u32 %s107, %s108
      %p110 = scmp.eq.s32.totalorder %s109, 0
      %s112 = sadd.s32 %s111, 1
      %s113 = scalar_select %p110, %s111, %s112
      %p116 = pneg %p110
      %p117 = scmp.eq.s32.totalorder %s12, 3
      %p118 = por %p116, %p117
      %p119 = scmp.ne.s32.totalorder %s111, %s114
      %p120 = scmp.eq.s32.totalorder %s12, 0
      %p121 = por %p119, %p120
      %p122 = scmp.ne.s32.totalorder %s111, %s114
      %p123 = scmp.eq.s32.totalorder %s17, 3
      %p124 = por %p122, %p123
      %p125 = scmp.ne.s32.totalorder %s114, %s115
      %p126 = scmp.eq.s32.totalorder %s17, 0
      %p127 = por %p125, %p126
      %p128 = scmp.ne.s32.totalorder %s114, %s115
      %p129 = scmp.eq.s32.totalorder %s18, 3
      %p130 = por %p128, %p129
      %p132 = scmp.ne.s32.totalorder %s115, %s131
      %p133 = scmp.eq.s32.totalorder %s18, 0
      %p134 = por %p132, %p133
      %p135 = scmp.le.s32.totalorder 1, %s12
      %p136 = scmp.lt.s32.totalorder %s12, 5
      %p137 = pnand %p135, %p136
      %p138 = pneg %p137
      // Predicated region
      $region9: #{tpu_custom_call.1} parent=5 // pred_check
        _
      $region10: #{tpu_custom_call.1} parent=5 // pred_check_branch
        %140 = sbr.rel (%p137) target = $region12
      $region11: #{tpu_custom_call.1} parent=5 // pred_region
        %s141 = ssub.s32 %s12, 1
        // Predicated region
        $region13: #{tpu_custom_call.1} parent=11 // pred_check
          %p142 = pneg %p99
        $region14: #{tpu_custom_call.1} parent=11 // pred_check_branch
          %144 = sbr.rel (%p142) target = $region16
        $region15: #{tpu_custom_call.1} parent=11 // pred_region
          _
        $region16: #{tpu_custom_call.1} parent=11 // pred_fallthru
          _
      $region12: #{tpu_custom_call.1} parent=5 // pred_fallthru
        _
      %p145 = scmp.lt.s32.totalorder %s12, 4
      // Predicated region
      $region17: #{tpu_custom_call.1} parent=5 // pred_check
        %p146 = pneg %p145
      $region18: #{tpu_custom_call.1} parent=5 // pred_check_branch
        %148 = sbr.rel (%p146) target = $region20
      $region19: #{tpu_custom_call.1} parent=5 // pred_region
        // Predicated region
        $region21: #{tpu_custom_call.1} parent=19 // pred_check
          %p149 = pneg %p44
        $region22: #{tpu_custom_call.1} parent=19 // pred_check_branch
          %151 = sbr.rel (%p149) target = $region24
        $region23: #{tpu_custom_call.1} parent=19 // pred_region
          %p152 = scmp.lt.s32.totalorder %s19, 1
          %s153 = scalar_select %p152, %s19, 1
          %s154 = smul.addr %s153, 8
          %s155 = scalar_lea.vmem %s0, %s154
        $region24: #{tpu_custom_call.1} parent=19 // pred_fallthru
          _
        // Predicated region
        $region25: #{tpu_custom_call.1} parent=19 // pred_check
          %p156 = pneg %p72
        $region26: #{tpu_custom_call.1} parent=19 // pred_check_branch
          %158 = sbr.rel (%p156) target = $region28
        $region27: #{tpu_custom_call.1} parent=19 // pred_region
          %p159 = scmp.lt.s32.totalorder %s19, 1
          %s160 = scalar_select %p159, %s19, 1
          %p161 = scmp.lt.s32.totalorder %s20, 1
          %s162 = scalar_select %p161, %s20, 1
          %s163 = smul.addr %s160, 2
          %s164 = sadd.s32 %s162, %s163
          %s165 = smul.addr %s164, 4
          %s166 = scalar_lea.vmem %s1, %s165
        $region28: #{tpu_custom_call.1} parent=19 // pred_fallthru
          _
      $region20: #{tpu_custom_call.1} parent=5 // pred_fallthru
        _
      %p167 = scmp.le.s32.totalorder 1, %s12
      %p168 = scmp.lt.s32.totalorder %s12, 5
      %p169 = pnand %p167, %p168
      %p170 = pneg %p169
      // Predicated region
      $region29: #{tpu_custom_call.1} parent=5 // pred_check
        _
      $region30: #{tpu_custom_call.1} parent=5 // pred_check_branch
        %172 = sbr.rel (%p169) target = $region32
      $region31: #{tpu_custom_call.1} parent=5 // pred_region
        %s173 = ssub.s32 %s12, 1
        %p174 = scmp.lt.s32.totalorder %s21, 1
        %s175 = scalar_select %p174, %s21, 1
        %s176 = smul.addr %s175, 8
        %s177 = scalar_lea.vmem %s0, %s176
        %p178 = pneg %p50
        %p179 = pneg %p47
        %p180 = scmp.lt.s32.totalorder %s21, 1
        %s181 = scalar_select %p180, %s21, 1
        %p182 = scmp.lt.s32.totalorder %s22, 1
        %s183 = scalar_select %p182, %s22, 1
        %s184 = smul.addr %s181, 2
        %s185 = sadd.s32 %s183, %s184
        %s186 = smul.addr %s185, 4
        %s187 = scalar_lea.vmem %s1, %s186
        %p188 = pneg %p78
        %p189 = pneg %p75
        %p190 = pneg %p99
        %p191 = pneg %p96
        %p192 = pneg %p127
        %p193 = pneg %p124
        %s194 = sand.u32 %s114, 1
        %s195 = scalar_lea.sflag [#allocation3], %s194
        %s196 = sand.u32 %s114, 1
        %s197 = smul.addr %s196, 8
        %s198 = scalar_lea.vmem [#allocation2], %s197
        %p199 = scmp.lt.s32.totalorder %s21, 1
        %s200 = scalar_select %p199, %s21, 1
        %s201 = smul.addr %s200, 8
        %s202 = scalar_lea.vmem %s0, %s201
        %p203 = scmp.lt.s32.totalorder %s21, 1
        %s204 = scalar_select %p203, %s21, 1
        %p205 = scmp.lt.s32.totalorder %s22, 1
        %s206 = scalar_select %p205, %s22, 1
        %s207 = smul.addr %s204, 2
        %s208 = sadd.s32 %s206, %s207
        %s209 = smul.addr %s208, 4
        %s210 = scalar_lea.vmem %s1, %s209
        %v211 = vld [vmem:[%s202] sm:$0xff]
        %v212 = vld [vmem:[%s210] sm:$0xf]
        %v213 = vld [vmem:[%s2] sm:$0xff]
        %215 = vset.pattern.permute.xlu0 0
        %216 = vperm.xlu0 %215, %v213
        %v217 = vpop.permute.xlu0 %216
        %vm219 = vcmask 31744
        %v221 = vsel %vm219, %v211, 0
        %vm223 = vcmask 1043456
        %v225 = vsel %vm223, %v212, 0
        %227 = vmatpush.msra.mxu0 0.0
        %228 = vmatpush.msra.mxu0 0.0
        %229 = vmatpush.msra.mxu0 0.0
        %230 = vmatpush.msra.mxu0 0.0
        %231 = vmatpush.msra.mxu0 0.0
        %232 = vmatpush.msra.mxu0 0.0
        %233 = vmatpush.msra.mxu0 0.0
        %234 = vmatpush.msra.mxu0 0.0
        %235 = vmatpush.msra.mxu0 0.0
        %236 = vmatpush.msra.mxu0 0.0
        %237 = vmatpush.msra.mxu0 0.0
        %238 = vmatpush.msra.mxu0 0.0
        %239 = vmatpush.msra.mxu0 0.0
        %240 = vmatpush.msra.mxu0 0.0
        %241 = vmatpush.msra.mxu0 0.0
        %v242 = vand.u32 %v225, 4294901760
        %243 = vmatpush.msra.mxu0 %v242
        %v244 = vand.u32 %v221, 4294901760
        %v245 = vsub.f32 %v221, %v244
        %v246 = vand.u32 %v245, 4294901760
        %v247 = vsub.f32 %v245, %v246
        %v248 = vand.u32 %v247, 4294901760
        %249 = vmatmul.f32.gmra.mxu0 %v248
        %v250 = vpop.f32.mrf.mxu0
        %v251 = vadd.f32 %v217, %v250
        %252 = vdwg.mxu0
        %253 = vmatpush.msra.mxu0 0.0
        %254 = vmatpush.msra.mxu0 0.0
        %255 = vmatpush.msra.mxu0 0.0
        %256 = vmatpush.msra.mxu0 0.0
        %257 = vmatpush.msra.mxu0 0.0
        %258 = vmatpush.msra.mxu0 0.0
        %259 = vmatpush.msra.mxu0 0.0
        %260 = vmatpush.msra.mxu0 0.0
        %261 = vmatpush.msra.mxu0 0.0
        %262 = vmatpush.msra.mxu0 0.0
        %263 = vmatpush.msra.mxu0 0.0
        %264 = vmatpush.msra.mxu0 0.0
        %265 = vmatpush.msra.mxu0 0.0
        %266 = vmatpush.msra.mxu0 0.0
        %267 = vmatpush.msra.mxu0 0.0
        %v268 = vand.u32 %v225, 4294901760
        %v269 = vsub.f32 %v225, %v268
        %v270 = vand.u32 %v269, 4294901760
        %v271 = vsub.f32 %v269, %v270
        %v272 = vand.u32 %v271, 4294901760
        %273 = vmatpush.msra.mxu0 %v272
        %v274 = vand.u32 %v221, 4294901760
        %275 = vmatmul.f32.gmra.mxu0 %v274
        %v276 = vpop.f32.mrf.mxu0
        %v277 = vadd.f32 %v251, %v276
        %278 = vdwg.mxu0
        %279 = vmatpush.msra.mxu0 0.0
        %280 = vmatpush.msra.mxu0 0.0
        %281 = vmatpush.msra.mxu0 0.0
        %282 = vmatpush.msra.mxu0 0.0
        %283 = vmatpush.msra.mxu0 0.0
        %284 = vmatpush.msra.mxu0 0.0
        %285 = vmatpush.msra.mxu0 0.0
        %286 = vmatpush.msra.mxu0 0.0
        %287 = vmatpush.msra.mxu0 0.0
        %288 = vmatpush.msra.mxu0 0.0
        %289 = vmatpush.msra.mxu0 0.0
        %290 = vmatpush.msra.mxu0 0.0
        %291 = vmatpush.msra.mxu0 0.0
        %292 = vmatpush.msra.mxu0 0.0
        %293 = vmatpush.msra.mxu0 0.0
        %v294 = vand.u32 %v225, 4294901760
        %v295 = vsub.f32 %v225, %v294
        %296 = vmatpush.msra.mxu0 %v295
        %v297 = vand.u32 %v221, 4294901760
        %v298 = vsub.f32 %v221, %v297
        %299 = vmatmul.f32.gmra.mxu0 %v298
        %v300 = vpop.f32.mrf.mxu0
        %v301 = vadd.f32 %v277, %v300
        %302 = vdwg.mxu0
        %303 = vmatpush.msra.mxu0 0.0
        %304 = vmatpush.msra.mxu0 0.0
        %305 = vmatpush.msra.mxu0 0.0
        %306 = vmatpush.msra.mxu0 0.0
        %307 = vmatpush.msra.mxu0 0.0
        %308 = vmatpush.msra.mxu0 0.0
        %309 = vmatpush.msra.mxu0 0.0
        %310 = vmatpush.msra.mxu0 0.0
        %311 = vmatpush.msra.mxu0 0.0
        %312 = vmatpush.msra.mxu0 0.0
        %313 = vmatpush.msra.mxu0 0.0
        %314 = vmatpush.msra.mxu0 0.0
        %315 = vmatpush.msra.mxu0 0.0
        %316 = vmatpush.msra.mxu0 0.0
        %317 = vmatpush.msra.mxu0 0.0
        %v318 = vand.u32 %v225, 4294901760
        %319 = vmatpush.msra.mxu0 %v318
        %v320 = vand.u32 %v221, 4294901760
        %v321 = vsub.f32 %v221, %v320
        %v322 = vand.u32 %v321, 4294901760
        %323 = vmatmul.f32.gmra.mxu0 %v322
        %v324 = vpop.f32.mrf.mxu0
        %v325 = vadd.f32 %v301, %v324
        %326 = vdwg.mxu0
        %327 = vmatpush.msra.mxu0 0.0
        %328 = vmatpush.msra.mxu0 0.0
        %329 = vmatpush.msra.mxu0 0.0
        %330 = vmatpush.msra.mxu0 0.0
        %331 = vmatpush.msra.mxu0 0.0
        %332 = vmatpush.msra.mxu0 0.0
        %333 = vmatpush.msra.mxu0 0.0
        %334 = vmatpush.msra.mxu0 0.0
        %335 = vmatpush.msra.mxu0 0.0
        %336 = vmatpush.msra.mxu0 0.0
        %337 = vmatpush.msra.mxu0 0.0
        %338 = vmatpush.msra.mxu0 0.0
        %339 = vmatpush.msra.mxu0 0.0
        %340 = vmatpush.msra.mxu0 0.0
        %341 = vmatpush.msra.mxu0 0.0
        %v342 = vand.u32 %v225, 4294901760
        %v343 = vsub.f32 %v225, %v342
        %v344 = vand.u32 %v343, 4294901760
        %345 = vmatpush.msra.mxu0 %v344
        %v346 = vand.u32 %v221, 4294901760
        %347 = vmatmul.f32.gmra.mxu0 %v346
        %v348 = vpop.f32.mrf.mxu0
        %v349 = vadd.f32 %v325, %v348
        %350 = vdwg.mxu0
        %351 = vmatpush.msra.mxu0 0.0
        %352 = vmatpush.msra.mxu0 0.0
        %353 = vmatpush.msra.mxu0 0.0
        %354 = vmatpush.msra.mxu0 0.0
        %355 = vmatpush.msra.mxu0 0.0
        %356 = vmatpush.msra.mxu0 0.0
        %357 = vmatpush.msra.mxu0 0.0
        %358 = vmatpush.msra.mxu0 0.0
        %359 = vmatpush.msra.mxu0 0.0
        %360 = vmatpush.msra.mxu0 0.0
        %361 = vmatpush.msra.mxu0 0.0
        %362 = vmatpush.msra.mxu0 0.0
        %363 = vmatpush.msra.mxu0 0.0
        %364 = vmatpush.msra.mxu0 0.0
        %365 = vmatpush.msra.mxu0 0.0
        %v366 = vand.u32 %v225, 4294901760
        %367 = vmatpush.msra.mxu0 %v366
        %v368 = vand.u32 %v221, 4294901760
        %369 = vmatmul.f32.gmra.mxu0 %v368
        %v370 = vpop.f32.mrf.mxu0
        %v371 = vadd.f32 %v349, %v370
        %372 = vdwg.mxu0
        %v373 = vmul.f32 %v371, 0.2
        %v374 = vmax.f32 %v371, %v373
        %375 = vst [vmem:[%s198] sm:$0xff] %v374
        %s376 = sand.u32 %s114, 1
        %s377 = scalar_lea.sflag [#allocation3], %s376
        %s378 = sand.u32 %s114, 1
        %s379 = smul.addr %s378, 8
        %s380 = scalar_lea.vmem [#allocation2], %s379
        // Predicated region
        $region33: #{tpu_custom_call.1} parent=31 // pred_check
          %p381 = pneg %p124
        $region34: #{tpu_custom_call.1} parent=31 // pred_check_branch
          %383 = sbr.rel (%p381) target = $region36
        $region35: #{tpu_custom_call.1} parent=31 // pred_region
          %385 = vsyncadd %s377, 0
          %s386 = smul.addr %s21, 2
          %s387 = sadd.s32 %s22, %s386
          %s388 = smul.addr %s387, 8
          %s389 = scalar_lea.hbm %s3, %s388
          %s391 = sshll.u32 %s380, 4
          %s392 = int_to_ptr.vmem [resolvable:$true] %s391
          %s393 = sshll.u32 %s389, 4
          %s394 = int_to_ptr.hbm [resolvable:$true] %s393
          %396 = dma.vmem_to_hbm [thread:$0]  %s392, 128, %s394, %s377
        $region36: #{tpu_custom_call.1} parent=31 // pred_fallthru
          _
      $region32: #{tpu_custom_call.1} parent=5 // pred_fallthru
        _
      %p397 = scmp.le.s32.totalorder 2, %s12
      // Predicated region
      $region37: #{tpu_custom_call.1} parent=5 // pred_check
        %p398 = pneg %p397
      $region38: #{tpu_custom_call.1} parent=5 // pred_check_branch
        %400 = sbr.rel (%p398) target = $region40
      $region39: #{tpu_custom_call.1} parent=5 // pred_region
        %s401 = ssub.s32 %s12, 2
        // Predicated region
        $region41: #{tpu_custom_call.1} parent=39 // pred_check
          %p402 = pneg %p130
        $region42: #{tpu_custom_call.1} parent=39 // pred_check_branch
          %404 = sbr.rel (%p402) target = $region44
        $region43: #{tpu_custom_call.1} parent=39 // pred_region
          %s405 = sand.u32 %s115, 1
          %s406 = scalar_lea.sflag [#allocation3], %s405
          %s407 = sand.u32 %s115, 1
          %s408 = smul.addr %s407, 8
          %s409 = scalar_lea.vmem [#allocation2], %s408
          %411 = dma.done %s406, 128
        $region44: #{tpu_custom_call.1} parent=39 // pred_fallthru
          _
      $region40: #{tpu_custom_call.1} parent=5 // pred_fallthru
        _
    $region6: #{tpu_custom_call.1} parent=1 // loop_footer
      %s16 = sadd.s32 1, %s12
    $region7: #{tpu_custom_call.1} parent=1 // loop_footer_branch
      %11 = sbr.rel target = $region3
    $region8: #{tpu_custom_call.1} parent=1 // loop_exit
      _
    %412 = vsyncpa [#allocation3], 1
    %s413 = scalar_lea.sflag [#allocation3], 1
    %414 = vsyncpa %s413, 1

</llo_original>
